<compile_context>
chip_gen: v7x
topology: tpu7x:2x2x1
jax: 0.10.0
libtpu: 0.0.40
codegen_flags: <defaults>
</compile_context>

<pallas_src>
import jax
import jax.numpy as jnp
from jax.experimental import pallas as pl
from jax.experimental.pallas import tpu as pltpu


def _round_up(x, m):
    return ((x + m - 1) // m) * m


def _local_linear_kernel(xu_ref, w_ref, b_ref, o_ref):
    """One (batch-tile, fold-tile) block of the locally connected layer.

    All operands carry the (padded) fold axis on the lane (last) dim, so every
    vreg, DMA and store is lane-dense.

    xu_ref: (K, TB, TF)  k-shifted strided views of the padded input
    w_ref:  (K, L,  TF)  per-fold weights, fold on lanes
    b_ref:  (L,  TF)     per-fold bias,    fold on lanes
    o_ref:  (TB, L, TF)  output block,     fold on lanes
    """
    k_size, tb, tf = xu_ref.shape
    l = w_ref.shape[1]
    # Fold the bias add into the f32 accumulator init.
    acc = jnp.broadcast_to(b_ref[...].astype(jnp.float32)[None, :, :], (tb, l, tf))
    # kernel_size is small and static -> unrolled VPU multiply-accumulate.
    for k in range(k_size):
        xk = xu_ref[k].astype(jnp.float32)            # (TB, TF)
        wk = w_ref[k].astype(jnp.float32)             # (L,  TF)
        acc = acc + xk[:, None, :] * wk[None, :, :]
    o_ref[...] = acc.astype(o_ref.dtype)


def local_linear(x, weight, bias=None, *, kernel_size, padding=0, stride=1):
    """Pallas TPU forward pass of LocalLinear.

    x: (B, in_features); weight: (fold_num, kernel_size, local_features);
    bias: (fold_num, local_features) or None.
    Returns (B, fold_num, local_features) in the promoted dtype of x/weight.
    """
    x = jnp.asarray(x)
    weight = jnp.asarray(weight)
    b, in_features = x.shape
    fold_num, k_size, local_features = weight.shape
    assert k_size == kernel_size
    assert fold_num == (in_features + 2 * padding - kernel_size) // stride + 1
    out_dtype = jnp.result_type(x.dtype, weight.dtype)
    if bias is None:
        bias = jnp.zeros((fold_num, local_features), out_dtype)
    else:
        bias = jnp.asarray(bias)

    # --- batch tiling: second "parallel" grid axis; bounds VMEM as B grows ----
    tb = b if b <= 256 else 256
    b_pad = _round_up(b, tb)
    n_b = b_pad // tb

    # --- fold-axis (lane) tiling ----------------------------------------------
    f128 = _round_up(fold_num, 128)
    if f128 <= 256:
        tf = f128
    else:
        # Big lane-dense tiles; keep >= 2 fold steps so double-buffering and the
        # v7x 2-TC megacore split over the "parallel" fold axis stay active.
        tf = min(2048, _round_up(f128 // 2, 128))
    # VMEM budget: double-buffered working set well under the smallest scoped
    # default (16 MiB on v5e; v7x has only 64 MiB physical VMEM).
    bytes_per_fold_lane = (
        kernel_size * tb * x.dtype.itemsize                     # xu slab
        + kernel_size * local_features * weight.dtype.itemsize  # weight slab
        + local_features * bias.dtype.itemsize                  # bias slab
        + tb * local_features * out_dtype.itemsize)             # output slab
    while tf > 128 and 2 * bytes_per_fold_lane * tf > 12 * 2**20:
        tf = _round_up(tf // 2, 128)
    f_pad = _round_up(fold_num, tf)
    n_f = f_pad // tf

    # --- host-side layout plumbing: fold axis on lanes everywhere --------------
    # weight: (fold, K, L) -> (K, L, f_pad);  bias: (fold, L) -> (L, f_pad)
    w_t = jnp.pad(jnp.transpose(weight, (1, 2, 0)),
                  ((0, 0), (0, 0), (0, f_pad - fold_num)))
    b_t = jnp.pad(jnp.transpose(bias, (1, 0)), ((0, 0), (0, f_pad - fold_num)))

    # --- compact "unfold": K strided shifted views of the padded input ---------
    # xu[k, b, f] = x_padded[b, f*stride + k]  (zeros past the valid range).
    p_ext = max((f_pad - 1) * stride + kernel_size, in_features + 2 * padding)
    x_ext = jnp.pad(x, ((0, b_pad - b), (padding, p_ext - in_features - padding)))
    xu = jnp.stack(
        [x_ext[:, k: k + (f_pad - 1) * stride + 1: stride]
         for k in range(kernel_size)],
        axis=0,
    )  # (K, b_pad, f_pad)
    # TODO(synk): for stride==1 the K shifted copies could be replaced by a single
    # overlapping-window input plus in-kernel pltpu.roll (XLU slot is idle here)
    # to cut input HBM traffic K-fold; only matters for large B*in_features.

    out_t = pl.pallas_call(
        _local_linear_kernel,
        out_shape=jax.ShapeDtypeStruct((b_pad, local_features, f_pad), out_dtype),
        grid=(n_b, n_f),
        in_specs=[
            pl.BlockSpec((kernel_size, tb, tf), lambda ib, jf: (0, ib, jf)),
            pl.BlockSpec((kernel_size, local_features, tf), lambda ib, jf: (0, 0, jf)),
            pl.BlockSpec((local_features, tf), lambda ib, jf: (0, jf)),
        ],
        out_specs=pl.BlockSpec((tb, local_features, tf), lambda ib, jf: (ib, 0, jf)),
        compiler_params=pltpu.CompilerParams(
            dimension_semantics=("parallel", "parallel")),
    )(xu, w_t, b_t)

    # (b_pad, L, f_pad) -> (B, fold_num, L): cheap transpose of the small output.
    return jnp.transpose(out_t, (0, 2, 1))[:b, :fold_num, :]


def _reference(x, weight, bias, kernel_size, padding, stride):
    # Pure-JAX reference matching the PyTorch forward (exact f32, no MXU paths).
    fold_num, k_size, _ = weight.shape
    xp = jnp.pad(x, ((0, 0), (padding, padding)))
    idx = jnp.arange(fold_num)[:, None] * stride + jnp.arange(k_size)[None, :]
    xw = xp[:, idx]                                          # (B, fold, K)
    out = jnp.sum(xw[:, :, :, None] * weight[None], axis=2)  # (B, fold, L)
    if bias is not None:
        out = out + bias[None]
    return out


if __name__ == "__main__":
    key = jax.random.PRNGKey(0)
    k1, k2, k3, k4, k5 = jax.random.split(key, 5)

    # Config 1: small shapes matching the module's intent (single fold tile).
    b1, in1, l1, ks1, pad1, st1 = 2, 16, 4, 3, 1, 1
    f1 = (in1 + 2 * pad1 - ks1) // st1 + 1                 # 16
    x1 = jax.random.normal(k1, (b1, in1), jnp.float32)
    w1 = jax.random.normal(k2, (f1, ks1, l1), jnp.float32)
    bb1 = jax.random.normal(k3, (f1, l1), jnp.float32)
    y1 = jax.block_until_ready(
        local_linear(x1, w1, bb1, kernel_size=ks1, padding=pad1, stride=st1))
    r1 = _reference(x1, w1, bb1, ks1, pad1, st1)
    assert y1.shape == (b1, f1, l1)
    assert jnp.allclose(y1, r1, atol=1e-4, rtol=1e-4)

    # Config 2: exercises the multi-tile pipelined path (2 fold tiles with a
    # zero-padded last tile), stride > 1, and bias=None.
    b2, in2, l2, ks2, pad2, st2 = 3, 600, 8, 5, 2, 2
    f2 = (in2 + 2 * pad2 - ks2) // st2 + 1                 # 300
    x2 = jax.random.normal(k4, (b2, in2), jnp.float32)
    w2 = jax.random.normal(k5, (f2, ks2, l2), jnp.float32)
    y2 = jax.block_until_ready(
        local_linear(x2, w2, None, kernel_size=ks2, padding=pad2, stride=st2))
    r2 = _reference(x2, w2, None, ks2, pad2, st2)
    assert y2.shape == (b2, f2, l2)
    assert jnp.allclose(y2, r2, atol=1e-4, rtol=1e-4)

    print("KERNEL_OK")
</pallas_src>

<mosaic_0001>
module attributes {stable_mosaic.version = 11 : i64} {
  func.func @_local_linear_kernel(%arg0: i32, %arg1: i32, %arg2: memref<3x2x128xf32, #tpu.memory_space<vmem>>, %arg3: memref<3x4x128xf32, #tpu.memory_space<vmem>>, %arg4: memref<4x128xf32, #tpu.memory_space<vmem>>, %arg5: memref<2x4x128xf32, #tpu.memory_space<vmem>>) attributes {dimension_semantics = [#tpu.dimension_semantics<parallel>, #tpu.dimension_semantics<parallel>], iteration_bounds = array<i64: 1, 1>, scalar_prefetch = 0 : i64, scratch_operands = 0 : i64, tpu.core_type = #tpu.core_type<tc>, window_params = [{transform_indices = @transform_0, window_bounds = array<i64: 3, 2, 128>}, {transform_indices = @transform_1, window_bounds = array<i64: 3, 4, 128>}, {transform_indices = @transform_2, window_bounds = array<i64: 4, 128>}, {transform_indices = @transform_3, window_bounds = array<i64: 2, 4, 128>}]} {
    %c0 = arith.constant 0 : index
    %c0_0 = arith.constant 0 : index
    %0 = vector.load %arg4[%c0, %c0_0] : memref<4x128xf32, #tpu.memory_space<vmem>>, vector<4x128xf32>
    %1 = vector.shape_cast %0 : vector<4x128xf32> to vector<1x4x128xf32>
    %2 = vector.shape_cast %1 : vector<1x4x128xf32> to vector<1x4x128xf32>
    %3 = vector.broadcast %2 : vector<1x4x128xf32> to vector<2x4x128xf32>
    %c0_1 = arith.constant 0 : index
    %c0_2 = arith.constant 0 : index
    %c0_3 = arith.constant 0 : index
    %4 = vector.load %arg2[%c0_1, %c0_2, %c0_3] : memref<3x2x128xf32, #tpu.memory_space<vmem>>, vector<1x2x128xf32>
    %5 = vector.shape_cast %4 : vector<1x2x128xf32> to vector<2x128xf32>
    %c0_4 = arith.constant 0 : index
    %c0_5 = arith.constant 0 : index
    %c0_6 = arith.constant 0 : index
    %6 = vector.load %arg3[%c0_4, %c0_5, %c0_6] : memref<3x4x128xf32, #tpu.memory_space<vmem>>, vector<1x4x128xf32>
    %7 = vector.shape_cast %6 : vector<1x4x128xf32> to vector<4x128xf32>
    %8 = vector.shape_cast %5 : vector<2x128xf32> to vector<2x1x128xf32>
    %9 = vector.shape_cast %7 : vector<4x128xf32> to vector<1x4x128xf32>
    %10 = vector.broadcast %8 : vector<2x1x128xf32> to vector<2x4x128xf32>
    %11 = vector.broadcast %9 : vector<1x4x128xf32> to vector<2x4x128xf32>
    %12 = arith.mulf %10, %11 : vector<2x4x128xf32>
    %13 = arith.addf %3, %12 : vector<2x4x128xf32>
    %c1 = arith.constant 1 : index
    %c0_7 = arith.constant 0 : index
    %c0_8 = arith.constant 0 : index
    %14 = vector.load %arg2[%c1, %c0_7, %c0_8] : memref<3x2x128xf32, #tpu.memory_space<vmem>>, vector<1x2x128xf32>
    %15 = vector.shape_cast %14 : vector<1x2x128xf32> to vector<2x128xf32>
    %c1_9 = arith.constant 1 : index
    %c0_10 = arith.constant 0 : index
    %c0_11 = arith.constant 0 : index
    %16 = vector.load %arg3[%c1_9, %c0_10, %c0_11] : memref<3x4x128xf32, #tpu.memory_space<vmem>>, vector<1x4x128xf32>
    %17 = vector.shape_cast %16 : vector<1x4x128xf32> to vector<4x128xf32>
    %18 = vector.shape_cast %15 : vector<2x128xf32> to vector<2x1x128xf32>
    %19 = vector.shape_cast %17 : vector<4x128xf32> to vector<1x4x128xf32>
    %20 = vector.broadcast %18 : vector<2x1x128xf32> to vector<2x4x128xf32>
    %21 = vector.broadcast %19 : vector<1x4x128xf32> to vector<2x4x128xf32>
    %22 = arith.mulf %20, %21 : vector<2x4x128xf32>
    %23 = arith.addf %13, %22 : vector<2x4x128xf32>
    %c2 = arith.constant 2 : index
    %c0_12 = arith.constant 0 : index
    %c0_13 = arith.constant 0 : index
    %24 = vector.load %arg2[%c2, %c0_12, %c0_13] : memref<3x2x128xf32, #tpu.memory_space<vmem>>, vector<1x2x128xf32>
    %25 = vector.shape_cast %24 : vector<1x2x128xf32> to vector<2x128xf32>
    %c2_14 = arith.constant 2 : index
    %c0_15 = arith.constant 0 : index
    %c0_16 = arith.constant 0 : index
    %26 = vector.load %arg3[%c2_14, %c0_15, %c0_16] : memref<3x4x128xf32, #tpu.memory_space<vmem>>, vector<1x4x128xf32>
    %27 = vector.shape_cast %26 : vector<1x4x128xf32> to vector<4x128xf32>
    %28 = vector.shape_cast %25 : vector<2x128xf32> to vector<2x1x128xf32>
    %29 = vector.shape_cast %27 : vector<4x128xf32> to vector<1x4x128xf32>
    %30 = vector.broadcast %28 : vector<2x1x128xf32> to vector<2x4x128xf32>
    %31 = vector.broadcast %29 : vector<1x4x128xf32> to vector<2x4x128xf32>
    %32 = arith.mulf %30, %31 : vector<2x4x128xf32>
    %33 = arith.addf %23, %32 : vector<2x4x128xf32>
    %c0_17 = arith.constant 0 : index
    %c0_18 = arith.constant 0 : index
    %c0_19 = arith.constant 0 : index
    %34 = vector.load %arg5[%c0_17, %c0_18, %c0_19] : memref<2x4x128xf32, #tpu.memory_space<vmem>>, vector<2x4x128xf32>
    tpu.vector_store %arg5[%c0_17, %c0_18, %c0_19], %33 {strides = array<i32>} : memref<2x4x128xf32, #tpu.memory_space<vmem>>, vector<2x4x128xf32>,
    return
  }
  func.func @transform_0(%arg0: i32, %arg1: i32) -> (i32, i32, i32) {
    %c0_i32 = arith.constant 0 : i32
    %c0_i32_0 = arith.constant 0 : i32
    return %c0_i32, %arg0, %arg1 : i32, i32, i32
  }
  func.func @transform_1(%arg0: i32, %arg1: i32) -> (i32, i32, i32) {
    %c0_i32 = arith.constant 0 : i32
    %c0_i32_0 = arith.constant 0 : i32
    %c0_i32_1 = arith.constant 0 : i32
    return %c0_i32, %c0_i32_0, %arg1 : i32, i32, i32
  }
  func.func @transform_2(%arg0: i32, %arg1: i32) -> (i32, i32) {
    %c0_i32 = arith.constant 0 : i32
    %c0_i32_0 = arith.constant 0 : i32
    return %c0_i32, %arg1 : i32, i32
  }
  func.func @transform_3(%arg0: i32, %arg1: i32) -> (i32, i32, i32) {
    %c0_i32 = arith.constant 0 : i32
    %c0_i32_0 = arith.constant 0 : i32
    return %arg0, %c0_i32, %arg1 : i32, i32, i32
  }
}

</mosaic_0001>

<llo_original>
// kernel: tpu_custom_call.1
$region0: #{tpu_custom_call.1}
  #allocation0 [shape = 'u32[]', space=smem, size = 0x4, offset = 0x4, fixed_abs, tag = 'smem constant byte address 0x4 - core index']
  #allocation1 [shape = 'u32[144,128]{1,0:T(1,128)}', space=vmem, size = 0x12000, scoped, tag = 'internal scratch']
  %s0 = inlined_call_operand.hbm [shape: f32[3,2,128], index: 0, kind: input, shape index: {}]
  %s1 = inlined_call_operand.hbm [shape: f32[3,4,128], index: 1, kind: input, shape index: {}]
  %s2 = inlined_call_operand.vmem [shape: f32[4,128], index: 2, kind: input, shape index: {}]
  %s3 = inlined_call_operand.hbm [shape: f32[2,4,128], index: 3, kind: output, shape index: {}]
  %s4 = sld [smem:[#allocation0]]
  $region30: #{tpu_custom_call.1} parent=0
    _
  %s6 = ssub.s32 1, %s4
  %s7 = scalar_select 0, %s6, %s4
  $region1: #{tpu_custom_call.1} parent=0
    #allocation2 [shape = 'u8[3072]{0}', space=vmem, size = 0xc00, scoped, tag = 'input window, operand 0, single buffered']
    #allocation3 [shape = 's32[1]{0}', space=sflag, size = 0x4, scoped, tag = 'scoped memory for tpu_custom_call.1']
    #allocation4 [shape = 's32[1]{0}', space=sflag, size = 0x4, scoped, tag = 'scoped memory for tpu_custom_call.1']
    #allocation5 [shape = 'u8[6144]{0}', space=vmem, size = 0x1800, scoped, tag = 'input window, operand 1, single buffered']
    #allocation6 [shape = 's32[1]{0}', space=sflag, size = 0x4, scoped, tag = 'scoped memory for tpu_custom_call.1']
    #allocation7 [shape = 'u8[4096]{0}', space=vmem, size = 0x1000, scoped, tag = 'output window, operand 0, single buffered']
    %8 = vsyncpa [#allocation3], 0
    %9 = vsyncpa [#allocation6], 0
    %10 = vsyncpa [#allocation4], 0
    // Predicated region
    $region2: #{tpu_custom_call.1} parent=1 // pred_check
      _
    $region3: #{tpu_custom_call.1} parent=1 // pred_check_branch
      %12 = sbr.rel (0) target = $region5
    $region4: #{tpu_custom_call.1} parent=1 // pred_region
      %s14 = ssub.s32 96, 96
      %15 = vsyncadd [#allocation3], %s14
      %s16 = sshll.u32 [#allocation2], 4
      %s17 = int_to_ptr.vmem [resolvable:$true] %s16
      %22 = dma.hbm_to_vmem [thread:$0]  %s0, 96, %s17, [#allocation3], 32, 32, 2
    $region5: #{tpu_custom_call.1} parent=1 // pred_fallthru
      _
    // Predicated region
    $region6: #{tpu_custom_call.1} parent=1 // pred_check
      _
    $region7: #{tpu_custom_call.1} parent=1 // pred_check_branch
      %24 = sbr.rel (0) target = $region9
    $region8: #{tpu_custom_call.1} parent=1 // pred_region
      %s26 = ssub.s32 192, 192
      %27 = vsyncadd [#allocation6], %s26
      %s28 = sshll.u32 [#allocation5], 4
      %s29 = int_to_ptr.vmem [resolvable:$true] %s28
      %34 = dma.hbm_to_vmem [thread:$0]  %s1, 192, %s29, [#allocation6], 64, 64, 4
    $region9: #{tpu_custom_call.1} parent=1 // pred_fallthru
      _
    // Predicated region
    $region10: #{tpu_custom_call.1} parent=1 // pred_check
      _
    $region11: #{tpu_custom_call.1} parent=1 // pred_check_branch
      %36 = sbr.rel (0) target = $region13
    $region12: #{tpu_custom_call.1} parent=1 // pred_region
      _
    $region13: #{tpu_custom_call.1} parent=1 // pred_fallthru
      _
    // Predicated region
    $region14: #{tpu_custom_call.1} parent=1 // pred_check
      _
    $region15: #{tpu_custom_call.1} parent=1 // pred_check_branch
      %38 = sbr.rel (0) target = $region17
    $region16: #{tpu_custom_call.1} parent=1 // pred_region
      %39 = dma.done [#allocation3], 96
    $region17: #{tpu_custom_call.1} parent=1 // pred_fallthru
      _
    // Predicated region
    $region18: #{tpu_custom_call.1} parent=1 // pred_check
      _
    $region19: #{tpu_custom_call.1} parent=1 // pred_check_branch
      %41 = sbr.rel (0) target = $region21
    $region20: #{tpu_custom_call.1} parent=1 // pred_region
      %42 = dma.done [#allocation6], 192
    $region21: #{tpu_custom_call.1} parent=1 // pred_fallthru
      _
    %v43 = vld [vmem:[%s2] sm:$0xf]
    %v44 = vld [vmem:[#allocation2] sm:$0x3]
    %v45 = vld [vmem:[#allocation5] sm:$0xf]
    %v48 = vunpack.c.l.s4 1966171168
    %v49 = vunpack.c.0.s8 %v48
    %v50 = vlaneseq
    %v51 = vshrl.u32 %v50, 7
    %v52 = vsub.s32 %v49, %v51
    %v53 = vrot.slane %v44, %v52
    %v54 = vcombine.high %v53, %v53
    %v56 = vunpack.c.l.s4 1966171168
    %v57 = vunpack.c.0.s8 %v56
    %v58 = vlaneseq
    %v59 = vshrl.u32 %v58, 7
    %v60 = vsub.s32 %v57, %v59
    %v61 = vrot.slane %v53, %v60
    %v63 = vunpack.c.l.s4 1966171168
    %v64 = vunpack.c.0.s8 %v63
    %v65 = vlaneseq
    %v66 = vshrl.u32 %v65, 7
    %v67 = vsub.s32 %v64, %v66
    %v68 = vrot.slane %v54, %v67
    %v69 = vlaneseq
    %v70 = vshrl.u32 %v69, 7
    %v71 = vsub.s32 0, %v70
    %v72 = vrot.slane %v61, %v71
    %v73 = vlaneseq
    %v74 = vshrl.u32 %v73, 7
    %v75 = vsub.s32 0, %v74
    %v76 = vrot.slane %v68, %v75
    %v79 = vmul.f32 %v72, %v45
    %v80 = vmul.f32 %v76, %v45
    %v81 = vadd.f32 %v43, %v79
    %v82 = vadd.f32 %v43, %v80
    %s83 = scalar_lea.vmem [#allocation2], 2
    %v84 = vld [vmem:[%s83] sm:$0x3]
    %s85 = scalar_lea.vmem [#allocation5], 4
    %v86 = vld [vmem:[%s85] sm:$0xf]
    %v89 = vunpack.c.l.s4 1966171168
    %v90 = vunpack.c.0.s8 %v89
    %v91 = vlaneseq
    %v92 = vshrl.u32 %v91, 7
    %v93 = vsub.s32 %v90, %v92
    %v94 = vrot.slane %v84, %v93
    %v95 = vcombine.high %v94, %v94
    %v97 = vunpack.c.l.s4 1966171168
    %v98 = vunpack.c.0.s8 %v97
    %v99 = vlaneseq
    %v100 = vshrl.u32 %v99, 7
    %v101 = vsub.s32 %v98, %v100
    %v102 = vrot.slane %v94, %v101
    %v104 = vunpack.c.l.s4 1966171168
    %v105 = vunpack.c.0.s8 %v104
    %v106 = vlaneseq
    %v107 = vshrl.u32 %v106, 7
    %v108 = vsub.s32 %v105, %v107
    %v109 = vrot.slane %v95, %v108
    %v110 = vlaneseq
    %v111 = vshrl.u32 %v110, 7
    %v112 = vsub.s32 0, %v111
    %v113 = vrot.slane %v102, %v112
    %v114 = vlaneseq
    %v115 = vshrl.u32 %v114, 7
    %v116 = vsub.s32 0, %v115
    %v117 = vrot.slane %v109, %v116
    %v120 = vmul.f32 %v113, %v86
    %v121 = vmul.f32 %v117, %v86
    %v122 = vadd.f32 %v81, %v120
    %v123 = vadd.f32 %v82, %v121
    %s124 = scalar_lea.vmem [#allocation2], 4
    %v125 = vld [vmem:[%s124] sm:$0x3]
    %s126 = scalar_lea.vmem [#allocation5], 8
    %v127 = vld [vmem:[%s126] sm:$0xf]
    %v130 = vunpack.c.l.s4 1966171168
    %v131 = vunpack.c.0.s8 %v130
    %v132 = vlaneseq
    %v133 = vshrl.u32 %v132, 7
    %v134 = vsub.s32 %v131, %v133
    %v135 = vrot.slane %v125, %v134
    %v136 = vcombine.high %v135, %v135
    %v138 = vunpack.c.l.s4 1966171168
    %v139 = vunpack.c.0.s8 %v138
    %v140 = vlaneseq
    %v141 = vshrl.u32 %v140, 7
    %v142 = vsub.s32 %v139, %v141
    %v143 = vrot.slane %v135, %v142
    %v145 = vunpack.c.l.s4 1966171168
    %v146 = vunpack.c.0.s8 %v145
    %v147 = vlaneseq
    %v148 = vshrl.u32 %v147, 7
    %v149 = vsub.s32 %v146, %v148
    %v150 = vrot.slane %v136, %v149
    %v151 = vlaneseq
    %v152 = vshrl.u32 %v151, 7
    %v153 = vsub.s32 0, %v152
    %v154 = vrot.slane %v143, %v153
    %v155 = vlaneseq
    %v156 = vshrl.u32 %v155, 7
    %v157 = vsub.s32 0, %v156
    %v158 = vrot.slane %v150, %v157
    %v161 = vmul.f32 %v154, %v127
    %v162 = vmul.f32 %v158, %v127
    %v163 = vadd.f32 %v122, %v161
    %v164 = vadd.f32 %v123, %v162
    %165 = vst [vmem:[#allocation7] sm:$0xf] %v163
    %166 = vst [vmem:[#allocation7 + $0x4] sm:$0xf] %v164
    // Predicated region
    $region22: #{tpu_custom_call.1} parent=1 // pred_check
      _
    $region23: #{tpu_custom_call.1} parent=1 // pred_check_branch
      %168 = sbr.rel (0) target = $region25
    $region24: #{tpu_custom_call.1} parent=1 // pred_region
      %s170 = ssub.s32 128, 128
      %171 = vsyncadd [#allocation4], %s170
      %s172 = sshll.u32 [#allocation7], 4
      %s173 = int_to_ptr.vmem [resolvable:$true] %s172
      %178 = dma.vmem_to_hbm [thread:$0]  %s173, 128, %s3, [#allocation4], 64, 64, 4
    $region25: #{tpu_custom_call.1} parent=1 // pred_fallthru
      _
    // Predicated region
    $region26: #{tpu_custom_call.1} parent=1 // pred_check
      _
    $region27: #{tpu_custom_call.1} parent=1 // pred_check_branch
      %180 = sbr.rel (0) target = $region29
    $region28: #{tpu_custom_call.1} parent=1 // pred_region
      %181 = dma.done [#allocation4], 128
    $region29: #{tpu_custom_call.1} parent=1 // pred_fallthru
      _
    %182 = vsyncpa [#allocation3], 1
    %183 = vsyncpa [#allocation6], 1
    %184 = vsyncpa [#allocation4], 1

</llo_original>
